<compile_context>
chip_gen: v7x
topology: tpu7x:2x2x1
jax: 0.10.0
libtpu: 0.0.40
codegen_flags: <defaults>
</compile_context>

<pallas_src>
import functools

import jax
import jax.numpy as jnp
from jax.experimental import pallas as pl
from jax.experimental.pallas import tpu as pltpu


TB_DEFAULT = 4096   # batch tile (rows per grid step); multiple of 128
OUT_PAD = 8         # final layer padded 4 -> 8 outputs (native sublane count)


def _round_up(v, m):
    return ((v + m - 1) // m) * m


def _cdiv(a, b):
    return (a + b - 1) // b


def _leaky_relu(x, slope=0.1):
    return jnp.where(x > 0, x, slope * x)


def encoder_kernel(x_ref, w1_ref, b1_ref, w2_ref, b2_ref, w3_ref, b3_ref,
                   o_ref, *, mxu_dtype=None):
    x = x_ref[...]
    w1 = w1_ref[...]
    if mxu_dtype is not None:
        # v7x option: bf16 MXU operands for the dominant layer-1 matmul
        # (f32 accumulation via preferred_element_type).
        x = x.astype(mxu_dtype)
        w1 = w1.astype(mxu_dtype)

    # Layer 1: [tb, 224] @ [224, 64] + [1, 64]
    h = jnp.dot(x, w1, preferred_element_type=jnp.float32) + b1_ref[...]
    h = _leaky_relu(h)
    # Layer 2: [tb, 64] @ [64, 16] + [1, 16]
    h = jnp.dot(h, w2_ref[...], preferred_element_type=jnp.float32) + b2_ref[...]
    h = _leaky_relu(h)
    # Layer 3, computed transposed (NT matmul, same pattern as q @ k^T):
    #   w3 [8, 16] x h [tb, 16] -> [8, tb]   (lane-dense output block)
    out_t = jax.lax.dot_general(
        w3_ref[...], h,
        dimension_numbers=(((1,), (1,)), ((), ())),
        preferred_element_type=jnp.float32)
    o_ref[...] = (out_t + b3_ref[...]).astype(o_ref.dtype)


def encoder_net_forward(x, params, tb=TB_DEFAULT, mxu_dtype=None):
    """x: [B, 224]. params: dict (see init_params). Returns [B, 4] float32."""
    B, F = x.shape
    w1t, b1, w2t, b2, w3p, b3p = (params["w1t"], params["b1"], params["w2t"],
                                  params["b2"], params["w3p"], params["b3p"])
    n_out = w3p.shape[0]  # 8 (padded)

    # ---- batch tile selection -------------------------------------------
    # tb is the lane dim of the transposed output block -> multiple of 128
    # (which also satisfies the sublane requirement of the (tb, 224) x block).
    tb = max(128, _round_up(int(tb), 128))
    tb = min(tb, _round_up(B, 128))
    # v7x megacore: "parallel" grid axis is sharded across 2 TensorCores, so
    # prefer >= 2 grid steps once the batch is big enough to keep per-step
    # HBM time well above the ~0.35 us fixed overhead.
    if B >= 2048 and _cdiv(B, tb) < 2:
        tb = _round_up(_cdiv(B, 2), 128)

    Bp = _round_up(B, tb)
    if Bp != B:
        x = jnp.pad(x, ((0, Bp - B), (0, 0)))

    # Weights/biases: constant index_map -> resident in VMEM across all tiles.
    resident = lambda shape: pl.BlockSpec(shape, lambda i: tuple(0 for _ in shape))

    out_t = pl.pallas_call(
        functools.partial(encoder_kernel, mxu_dtype=mxu_dtype),
        out_shape=jax.ShapeDtypeStruct((n_out, Bp), jnp.float32),
        grid_spec=pl.GridSpec(
            grid=(Bp // tb,),
            in_specs=[
                pl.BlockSpec((tb, F), lambda i: (i, 0)),   # x (batch-tiled)
                resident(w1t.shape),                       # [224, 64]
                resident(b1.shape),                        # [1, 64]
                resident(w2t.shape),                       # [64, 16]
                resident(b2.shape),                        # [1, 16]
                resident(w3p.shape),                       # [8, 16]
                resident(b3p.shape),                       # [8, 1]
            ],
            # Lane-dense transposed output: block (8, tb), tb along lanes.
            out_specs=pl.BlockSpec((n_out, tb), lambda i: (0, i)),
        ),
        compiler_params=pltpu.CompilerParams(
            dimension_semantics=("parallel",),
            vmem_limit_bytes=48 * 1024 * 1024),
    )(x, w1t, b1, w2t, b2, w3p, b3p)

    # Un-transpose + drop padded output rows / batch rows (negligible traffic).
    return out_t[:4, :B].T


def init_params(key):
    """Deterministic synthetic parameters matching the PyTorch module shapes."""
    ks = jax.random.split(key, 6)

    # PyTorch Linear weight shape is (out, in).
    def lin(kw, kb, fan_in, fan_out):
        bound = 1.0 / jnp.sqrt(fan_in)
        w = jax.random.uniform(kw, (fan_out, fan_in), jnp.float32, -bound, bound)
        b = jax.random.uniform(kb, (fan_out,), jnp.float32, -bound, bound)
        return w, b

    w1, b1 = lin(ks[0], ks[1], 224, 64)
    w2, b2 = lin(ks[2], ks[3], 64, 16)
    w3, b3 = lin(ks[4], ks[5], 16, 4)

    # Layers 1/2: store transposed [in, out] for the standard (NN) matmuls.
    # Layer 3: keep PyTorch [out, in] orientation (used in the NT matmul),
    # zero-padded from 4 to 8 outputs; bias as a [8, 1] column.
    w3p = jnp.zeros((OUT_PAD, 16), jnp.float32).at[:4].set(w3)
    b3p = jnp.zeros((OUT_PAD, 1), jnp.float32).at[:4, 0].set(b3)
    return {"w1t": w1.T, "b1": b1.reshape(1, 64),
            "w2t": w2.T, "b2": b2.reshape(1, 16),
            "w3p": w3p, "b3p": b3p}


def reference_forward(x, p):
    h = x @ p["w1t"] + p["b1"]
    h = jnp.where(h > 0, h, 0.1 * h)
    h = h @ p["w2t"] + p["b2"]
    h = jnp.where(h > 0, h, 0.1 * h)
    return h @ p["w3p"][:4].T + p["b3p"][:4, 0]


if __name__ == "__main__":
    key = jax.random.PRNGKey(0)
    kx, kp = jax.random.split(key)
    params = init_params(kp)

    # Small test (single tile; batch padded up to one 128-row tile).
    B = 8
    x = jax.random.normal(kx, (B, 224), dtype=jnp.float32)
    out = jax.block_until_ready(encoder_net_forward(x, params))
    ref = reference_forward(x, params)
    assert out.shape == (B, 4)
    assert jnp.allclose(out, ref, atol=1e-5, rtol=1e-5), "mismatch vs reference (small B)"

    # Larger, non-tile-aligned batch: exercises the >=2-grid-step heuristic
    # (tb=1280, 2 tiles) and tail padding.
    B2 = 2500
    x2 = jax.random.normal(kx, (B2, 224), dtype=jnp.float32)
    out2 = jax.block_until_ready(encoder_net_forward(x2, params))
    ref2 = reference_forward(x2, params)
    assert out2.shape == (B2, 4)
    assert jnp.allclose(out2, ref2, atol=1e-4, rtol=1e-4), "mismatch vs reference (tiled B)"

    print("KERNEL_OK")
</pallas_src>

<mosaic_0001>
module attributes {stable_mosaic.version = 11 : i64} {
  func.func @encoder_kernel(%arg0: i32, %arg1: memref<128x224xf32, #tpu.memory_space<vmem>>, %arg2: memref<224x64xf32, #tpu.memory_space<vmem>>, %arg3: memref<1x64xf32, #tpu.memory_space<vmem>>, %arg4: memref<64x16xf32, #tpu.memory_space<vmem>>, %arg5: memref<1x16xf32, #tpu.memory_space<vmem>>, %arg6: memref<8x16xf32, #tpu.memory_space<vmem>>, %arg7: memref<8x1xf32, #tpu.memory_space<vmem>>, %arg8: memref<8x128xf32, #tpu.memory_space<vmem>>) attributes {dimension_semantics = [#tpu.dimension_semantics<parallel>], iteration_bounds = array<i64: 1>, scalar_prefetch = 0 : i64, scratch_operands = 0 : i64, tpu.core_type = #tpu.core_type<tc>, window_params = [{transform_indices = @transform_0, window_bounds = array<i64: 128, 224>}, {pipeline_mode = #tpu.pipeline_mode<synchronous>, transform_indices = @transform_1, window_bounds = array<i64: 224, 64>}, {pipeline_mode = #tpu.pipeline_mode<synchronous>, transform_indices = @transform_2, window_bounds = array<i64: 1, 64>}, {pipeline_mode = #tpu.pipeline_mode<synchronous>, transform_indices = @transform_3, window_bounds = array<i64: 64, 16>}, {pipeline_mode = #tpu.pipeline_mode<synchronous>, transform_indices = @transform_4, window_bounds = array<i64: 1, 16>}, {pipeline_mode = #tpu.pipeline_mode<synchronous>, transform_indices = @transform_5, window_bounds = array<i64: 8, 16>}, {pipeline_mode = #tpu.pipeline_mode<synchronous>, transform_indices = @transform_6, window_bounds = array<i64: 8, 1>}, {transform_indices = @transform_7, window_bounds = array<i64: 8, 128>}]} {
    %c0 = arith.constant 0 : index
    %c0_0 = arith.constant 0 : index
    %0 = vector.load %arg1[%c0, %c0_0] : memref<128x224xf32, #tpu.memory_space<vmem>>, vector<128x224xf32>
    %c0_1 = arith.constant 0 : index
    %c0_2 = arith.constant 0 : index
    %1 = vector.load %arg2[%c0_1, %c0_2] : memref<224x64xf32, #tpu.memory_space<vmem>>, vector<224x64xf32>
    %cst = arith.constant dense<0.000000e+00> : vector<128x64xf32>
    %2 = tpu.matmul %0, %1, %cst {dimension_numbers = #tpu.dot_dimension_numbers<[1], [0], [0], [1], [0, 0, 1, 1], [], []>} : vector<128x224xf32>, vector<224x64xf32>, vector<128x64xf32> -> vector<128x64xf32>
    %c0_3 = arith.constant 0 : index
    %c0_4 = arith.constant 0 : index
    %3 = vector.load %arg3[%c0_3, %c0_4] : memref<1x64xf32, #tpu.memory_space<vmem>>, vector<1x64xf32>
    %4 = vector.broadcast %3 : vector<1x64xf32> to vector<128x64xf32>
    %5 = arith.addf %2, %4 : vector<128x64xf32>
    %cst_5 = arith.constant 0.000000e+00 : f32
    %6 = vector.broadcast %cst_5 : f32 to vector<128x64xf32>
    %7 = arith.cmpf ogt, %5, %6 : vector<128x64xf32>
    %cst_6 = arith.constant 1.000000e-01 : f32
    %8 = vector.broadcast %cst_6 : f32 to vector<128x64xf32>
    %9 = arith.mulf %8, %5 : vector<128x64xf32>
    %10 = arith.select %7, %5, %9 : vector<128x64xi1>, vector<128x64xf32>
    %c0_7 = arith.constant 0 : index
    %c0_8 = arith.constant 0 : index
    %11 = vector.load %arg4[%c0_7, %c0_8] : memref<64x16xf32, #tpu.memory_space<vmem>>, vector<64x16xf32>
    %cst_9 = arith.constant dense<0.000000e+00> : vector<128x16xf32>
    %12 = tpu.matmul %10, %11, %cst_9 {dimension_numbers = #tpu.dot_dimension_numbers<[1], [0], [0], [1], [0, 0, 1, 1], [], []>} : vector<128x64xf32>, vector<64x16xf32>, vector<128x16xf32> -> vector<128x16xf32>
    %c0_10 = arith.constant 0 : index
    %c0_11 = arith.constant 0 : index
    %13 = vector.load %arg5[%c0_10, %c0_11] : memref<1x16xf32, #tpu.memory_space<vmem>>, vector<1x16xf32>
    %14 = vector.broadcast %13 : vector<1x16xf32> to vector<128x16xf32>
    %15 = arith.addf %12, %14 : vector<128x16xf32>
    %cst_12 = arith.constant 0.000000e+00 : f32
    %16 = vector.broadcast %cst_12 : f32 to vector<128x16xf32>
    %17 = arith.cmpf ogt, %15, %16 : vector<128x16xf32>
    %cst_13 = arith.constant 1.000000e-01 : f32
    %18 = vector.broadcast %cst_13 : f32 to vector<128x16xf32>
    %19 = arith.mulf %18, %15 : vector<128x16xf32>
    %20 = arith.select %17, %15, %19 : vector<128x16xi1>, vector<128x16xf32>
    %c0_14 = arith.constant 0 : index
    %c0_15 = arith.constant 0 : index
    %21 = vector.load %arg6[%c0_14, %c0_15] : memref<8x16xf32, #tpu.memory_space<vmem>>, vector<8x16xf32>
    %cst_16 = arith.constant dense<0.000000e+00> : vector<8x128xf32>
    %22 = tpu.matmul %21, %20, %cst_16 {dimension_numbers = #tpu.dot_dimension_numbers<[1], [1], [0], [0], [0, 0, 1, 0], [], []>} : vector<8x16xf32>, vector<128x16xf32>, vector<8x128xf32> -> vector<8x128xf32>
    %c0_17 = arith.constant 0 : index
    %c0_18 = arith.constant 0 : index
    %23 = vector.load %arg7[%c0_17, %c0_18] : memref<8x1xf32, #tpu.memory_space<vmem>>, vector<8x1xf32>
    %24 = vector.broadcast %23 : vector<8x1xf32> to vector<8x128xf32>
    %25 = arith.addf %22, %24 : vector<8x128xf32>
    %c0_19 = arith.constant 0 : index
    %c0_20 = arith.constant 0 : index
    %26 = vector.load %arg8[%c0_19, %c0_20] : memref<8x128xf32, #tpu.memory_space<vmem>>, vector<8x128xf32>
    tpu.vector_store %arg8[%c0_19, %c0_20], %25 {strides = array<i32>} : memref<8x128xf32, #tpu.memory_space<vmem>>, vector<8x128xf32>,
    return
  }
  func.func @transform_0(%arg0: i32) -> (i32, i32) {
    %c0_i32 = arith.constant 0 : i32
    %c0_i32_0 = arith.constant 0 : i32
    return %arg0, %c0_i32 : i32, i32
  }
  func.func @transform_1(%arg0: i32) -> (i32, i32) {
    %c0_i32 = arith.constant 0 : i32
    %c0_i32_0 = arith.constant 0 : i32
    %c0_i32_1 = arith.constant 0 : i32
    return %c0_i32, %c0_i32_0 : i32, i32
  }
  func.func @transform_2(%arg0: i32) -> (i32, i32) {
    %c0_i32 = arith.constant 0 : i32
    %c0_i32_0 = arith.constant 0 : i32
    %c0_i32_1 = arith.constant 0 : i32
    return %c0_i32, %c0_i32_0 : i32, i32
  }
  func.func @transform_3(%arg0: i32) -> (i32, i32) {
    %c0_i32 = arith.constant 0 : i32
    %c0_i32_0 = arith.constant 0 : i32
    %c0_i32_1 = arith.constant 0 : i32
    return %c0_i32, %c0_i32_0 : i32, i32
  }
  func.func @transform_4(%arg0: i32) -> (i32, i32) {
    %c0_i32 = arith.constant 0 : i32
    %c0_i32_0 = arith.constant 0 : i32
    %c0_i32_1 = arith.constant 0 : i32
    return %c0_i32, %c0_i32_0 : i32, i32
  }
  func.func @transform_5(%arg0: i32) -> (i32, i32) {
    %c0_i32 = arith.constant 0 : i32
    %c0_i32_0 = arith.constant 0 : i32
    %c0_i32_1 = arith.constant 0 : i32
    return %c0_i32, %c0_i32_0 : i32, i32
  }
  func.func @transform_6(%arg0: i32) -> (i32, i32) {
    %c0_i32 = arith.constant 0 : i32
    %c0_i32_0 = arith.constant 0 : i32
    %c0_i32_1 = arith.constant 0 : i32
    return %c0_i32, %c0_i32_0 : i32, i32
  }
  func.func @transform_7(%arg0: i32) -> (i32, i32) {
    %c0_i32 = arith.constant 0 : i32
    %c0_i32_0 = arith.constant 0 : i32
    return %c0_i32, %arg0 : i32, i32
  }
}

</mosaic_0001>

<llo_original>
// kernel: tpu_custom_call.1
$region0: #{tpu_custom_call.1}
  #allocation0 [shape = 'u32[]', space=smem, size = 0x4, offset = 0x4, fixed_abs, tag = 'smem constant byte address 0x4 - core index']
  #allocation1 [shape = 'u32[144,128]{1,0:T(1,128)}', space=vmem, size = 0x12000, scoped, tag = 'internal scratch']
  %s0 = inlined_call_operand.vmem [shape: f32[128,224], index: 0, kind: input, shape index: {}]
  %s1 = inlined_call_operand.vmem [shape: f32[224,64], index: 1, kind: input, shape index: {}]
  %s2 = inlined_call_operand.vmem [shape: f32[1,64], index: 2, kind: input, shape index: {}]
  %s3 = inlined_call_operand.vmem [shape: f32[64,16], index: 3, kind: input, shape index: {}]
  %s4 = inlined_call_operand.vmem [shape: f32[1,16], index: 4, kind: input, shape index: {}]
  %s5 = inlined_call_operand.vmem [shape: f32[8,16], index: 5, kind: input, shape index: {}]
  %s6 = inlined_call_operand.vmem [shape: f32[8,1], index: 6, kind: input, shape index: {}]
  %s7 = inlined_call_operand.hbm [shape: f32[8,128], index: 7, kind: output, shape index: {}]
  %s8 = sld [smem:[#allocation0]]
  $region38: #{tpu_custom_call.1} parent=0
    _
  %s10 = ssub.s32 1, %s8
  %s11 = scalar_select 0, %s10, %s8
  $region1: #{tpu_custom_call.1} parent=0
    #allocation2 [shape = 'u8[4096]{0}', space=vmem, size = 0x1000, scoped, tag = 'output window, operand 0, single buffered']
    #allocation3 [shape = 's32[1]{0}', space=sflag, size = 0x4, scoped, tag = 'scoped memory for tpu_custom_call.1']
    %12 = vsyncpa [#allocation3], 0
    // Predicated region
    $region2: #{tpu_custom_call.1} parent=1 // pred_check
      _
    $region3: #{tpu_custom_call.1} parent=1 // pred_check_branch
      %14 = sbr.rel (0) target = $region5
    $region4: #{tpu_custom_call.1} parent=1 // pred_region
      _
    $region5: #{tpu_custom_call.1} parent=1 // pred_fallthru
      _
    // Predicated region
    $region6: #{tpu_custom_call.1} parent=1 // pred_check
      _
    $region7: #{tpu_custom_call.1} parent=1 // pred_check_branch
      %16 = sbr.rel (0) target = $region9
    $region8: #{tpu_custom_call.1} parent=1 // pred_region
      _
    $region9: #{tpu_custom_call.1} parent=1 // pred_fallthru
      _
    // Predicated region
    $region10: #{tpu_custom_call.1} parent=1 // pred_check
      _
    $region11: #{tpu_custom_call.1} parent=1 // pred_check_branch
      %18 = sbr.rel (0) target = $region13
    $region12: #{tpu_custom_call.1} parent=1 // pred_region
      _
    $region13: #{tpu_custom_call.1} parent=1 // pred_fallthru
      _
    // Predicated region
    $region14: #{tpu_custom_call.1} parent=1 // pred_check
      _
    $region15: #{tpu_custom_call.1} parent=1 // pred_check_branch
      %20 = sbr.rel (0) target = $region17
    $region16: #{tpu_custom_call.1} parent=1 // pred_region
      _
    $region17: #{tpu_custom_call.1} parent=1 // pred_fallthru
      _
    // Predicated region
    $region18: #{tpu_custom_call.1} parent=1 // pred_check
      _
    $region19: #{tpu_custom_call.1} parent=1 // pred_check_branch
      %22 = sbr.rel (0) target = $region21
    $region20: #{tpu_custom_call.1} parent=1 // pred_region
      _
    $region21: #{tpu_custom_call.1} parent=1 // pred_fallthru
      _
    // Predicated region
    $region22: #{tpu_custom_call.1} parent=1 // pred_check
      _
    $region23: #{tpu_custom_call.1} parent=1 // pred_check_branch
      %24 = sbr.rel (0) target = $region25
    $region24: #{tpu_custom_call.1} parent=1 // pred_region
      _
    $region25: #{tpu_custom_call.1} parent=1 // pred_fallthru
      _
    // Predicated region
    $region26: #{tpu_custom_call.1} parent=1 // pred_check
      _
    $region27: #{tpu_custom_call.1} parent=1 // pred_check_branch
      %26 = sbr.rel (0) target = $region29
    $region28: #{tpu_custom_call.1} parent=1 // pred_region
      _
    $region29: #{tpu_custom_call.1} parent=1 // pred_fallthru
      _
    %v27 = vld [vmem:[%s0] sm:$0xff]
    %v28 = vld [vmem:[%s0 + $0x8] sm:$0xff]
    %v29 = vld [vmem:[%s0 + $0x10] sm:$0xff]
    %v30 = vld [vmem:[%s0 + $0x18] sm:$0xff]
    %v31 = vld [vmem:[%s0 + $0x20] sm:$0xff]
    %v32 = vld [vmem:[%s0 + $0x28] sm:$0xff]
    %v33 = vld [vmem:[%s0 + $0x30] sm:$0xff]
    %v34 = vld [vmem:[%s0 + $0x38] sm:$0xff]
    %v35 = vld [vmem:[%s0 + $0x40] sm:$0xff]
    %v36 = vld [vmem:[%s0 + $0x48] sm:$0xff]
    %v37 = vld [vmem:[%s0 + $0x50] sm:$0xff]
    %v38 = vld [vmem:[%s0 + $0x58] sm:$0xff]
    %v39 = vld [vmem:[%s0 + $0x60] sm:$0xff]
    %v40 = vld [vmem:[%s0 + $0x68] sm:$0xff]
    %v41 = vld [vmem:[%s0 + $0x70] sm:$0xff]
    %v42 = vld [vmem:[%s0 + $0x78] sm:$0xff]
    %v43 = vld [vmem:[%s0 + $0x80] sm:$0xff]
    %v44 = vld [vmem:[%s0 + $0x88] sm:$0xff]
    %v45 = vld [vmem:[%s0 + $0x90] sm:$0xff]
    %v46 = vld [vmem:[%s0 + $0x98] sm:$0xff]
    %v47 = vld [vmem:[%s0 + $0xa0] sm:$0xff]
    %v48 = vld [vmem:[%s0 + $0xa8] sm:$0xff]
    %v49 = vld [vmem:[%s0 + $0xb0] sm:$0xff]
    %v50 = vld [vmem:[%s0 + $0xb8] sm:$0xff]
    %v51 = vld [vmem:[%s0 + $0xc0] sm:$0xff]
    %v52 = vld [vmem:[%s0 + $0xc8] sm:$0xff]
    %v53 = vld [vmem:[%s0 + $0xd0] sm:$0xff]
    %v54 = vld [vmem:[%s0 + $0xd8] sm:$0xff]
    %v55 = vld [vmem:[%s0 + $0xe0] sm:$0xff]
    %v56 = vld [vmem:[%s0 + $0xe8] sm:$0xff]
    %v57 = vld [vmem:[%s0 + $0xf0] sm:$0xff]
    %v58 = vld [vmem:[%s0 + $0xf8] sm:$0xff]
    %v59 = vld [vmem:[%s1] sm:$0xff]
    %v60 = vld [vmem:[%s1 + $0x8] sm:$0xff]
    %v61 = vld [vmem:[%s1 + $0x10] sm:$0xff]
    %v62 = vld [vmem:[%s1 + $0x18] sm:$0xff]
    %v63 = vld [vmem:[%s1 + $0x20] sm:$0xff]
    %v64 = vld [vmem:[%s1 + $0x28] sm:$0xff]
    %v65 = vld [vmem:[%s1 + $0x30] sm:$0xff]
    %v66 = vld [vmem:[%s1 + $0x38] sm:$0xff]
    %v67 = vld [vmem:[%s1 + $0x40] sm:$0xff]
    %v68 = vld [vmem:[%s1 + $0x48] sm:$0xff]
    %v69 = vld [vmem:[%s1 + $0x50] sm:$0xff]
    %v70 = vld [vmem:[%s1 + $0x58] sm:$0xff]
    %v71 = vld [vmem:[%s1 + $0x60] sm:$0xff]
    %v72 = vld [vmem:[%s1 + $0x68] sm:$0xff]
    %v73 = vld [vmem:[%s1 + $0x70] sm:$0xff]
    %v74 = vld [vmem:[%s1 + $0x78] sm:$0xff]
    %v75 = vld [vmem:[%s1 + $0x80] sm:$0xff]
    %v76 = vld [vmem:[%s1 + $0x88] sm:$0xff]
    %v77 = vld [vmem:[%s1 + $0x90] sm:$0xff]
    %v78 = vld [vmem:[%s1 + $0x98] sm:$0xff]
    %v79 = vld [vmem:[%s1 + $0xa0] sm:$0xff]
    %v80 = vld [vmem:[%s1 + $0xa8] sm:$0xff]
    %v81 = vld [vmem:[%s1 + $0xb0] sm:$0xff]
    %v82 = vld [vmem:[%s1 + $0xb8] sm:$0xff]
    %v83 = vld [vmem:[%s1 + $0xc0] sm:$0xff]
    %v84 = vld [vmem:[%s1 + $0xc8] sm:$0xff]
    %v85 = vld [vmem:[%s1 + $0xd0] sm:$0xff]
    %v86 = vld [vmem:[%s1 + $0xd8] sm:$0xff]
    %v87 = vld [vmem:[%s2] sm:$0x1]
    %v89 = vlaneseq
    %v90 = vshrl.u32 %v89, 7
    %v91 = vsub.s32 0, %v90
    %v92 = vrot.slane %v87, %v91
    %vm94 = vcmask 785408
    %v96 = vsel %vm94, %v28, 0
    %v99 = vsel %vm94, %v30, 0
    %v102 = vsel %vm94, %v32, 0
    %v105 = vsel %vm94, %v34, 0
    %v108 = vsel %vm94, %v36, 0
    %v111 = vsel %vm94, %v38, 0
    %v114 = vsel %vm94, %v40, 0
    %v117 = vsel %vm94, %v42, 0
    %v120 = vsel %vm94, %v44, 0
    %v123 = vsel %vm94, %v46, 0
    %v126 = vsel %vm94, %v48, 0
    %v129 = vsel %vm94, %v50, 0
    %v132 = vsel %vm94, %v52, 0
    %v135 = vsel %vm94, %v54, 0
    %v138 = vsel %vm94, %v56, 0
    %v141 = vsel %vm94, %v58, 0
    %143 = vmatprep.subr.mxu0 0.0
    %144 = vmatpush1.msra.mxu0 %v59
    %145 = vmatprep.subr.mxu0 0.0
    %146 = vmatpush1.msra.mxu0 %v60
    %147 = vmatprep.subr.mxu0 0.0
    %148 = vmatpush1.msra.mxu0 %v61
    %149 = vmatprep.subr.mxu0 0.0
    %150 = vmatpush1.msra.mxu0 %v62
    %151 = vmatprep.subr.mxu0 0.0
    %152 = vmatpush1.msra.mxu0 %v63
    %153 = vmatprep.subr.mxu0 0.0
    %154 = vmatpush1.msra.mxu0 %v64
    %155 = vmatprep.subr.mxu0 0.0
    %156 = vmatpush1.msra.mxu0 %v65
    %157 = vmatprep.subr.mxu0 0.0
    %158 = vmatpush1.msra.mxu0 %v66
    %159 = vmatprep.subr.mxu0 0.0
    %160 = vmatpush1.msra.mxu0 %v67
    %161 = vmatprep.subr.mxu0 0.0
    %162 = vmatpush1.msra.mxu0 %v68
    %163 = vmatprep.subr.mxu0 0.0
    %164 = vmatpush1.msra.mxu0 %v69
    %165 = vmatprep.subr.mxu0 0.0
    %166 = vmatpush1.msra.mxu0 %v70
    %167 = vmatprep.subr.mxu0 0.0
    %168 = vmatpush1.msra.mxu0 %v71
    %169 = vmatprep.subr.mxu0 0.0
    %170 = vmatpush1.msra.mxu0 %v72
    %171 = vmatprep.subr.mxu0 0.0
    %172 = vmatpush1.msra.mxu0 %v73
    %173 = vmatprep.subr.mxu0 0.0
    %174 = vmatpush1.msra.mxu0 %v74
    %175 = vmatprep.subr.mxu0 0.0
    %176 = vmatpush1.msra.mxu0 %v75
    %177 = vmatprep.subr.mxu0 0.0
    %178 = vmatpush1.msra.mxu0 %v76
    %179 = vmatprep.subr.mxu0 0.0
    %180 = vmatpush1.msra.mxu0 %v77
    %181 = vmatprep.subr.mxu0 0.0
    %182 = vmatpush1.msra.mxu0 %v78
    %183 = vmatprep.subr.mxu0 0.0
    %184 = vmatpush1.msra.mxu0 %v79
    %185 = vmatprep.subr.mxu0 0.0
    %186 = vmatpush1.msra.mxu0 %v80
    %187 = vmatprep.subr.mxu0 0.0
    %188 = vmatpush1.msra.mxu0 %v81
    %189 = vmatprep.subr.mxu0 0.0
    %190 = vmatpush1.msra.mxu0 %v82
    %191 = vmatprep.subr.mxu0 0.0
    %192 = vmatpush1.msra.mxu0 %v83
    %193 = vmatprep.subr.mxu0 0.0
    %194 = vmatpush1.msra.mxu0 %v84
    %195 = vmatprep.subr.mxu0 0.0
    %196 = vmatpush1.msra.mxu0 %v85
    %197 = vmatprep.subr.mxu0 0.0
    %198 = vmatpush1.msra.mxu0 %v86
    %199 = vmatprep.subr.mxu0 0.0
    %200 = vmatpush1.msra.mxu0 0.0
    %201 = vmatprep.subr.mxu0 0.0
    %202 = vmatpush1.msra.mxu0 0.0
    %203 = vmatprep.subr.mxu0 0.0
    %204 = vmatpush1.msra.mxu0 0.0
    %205 = vmatprep.subr.mxu0 0.0
    %206 = vmatpush1.msra.mxu0 0.0
    %207 = vmatprep.mubr.f32.mxu0 %v96
    %208 = vmatmul.mubr.f32.gmra.mrb[0].mxu0 %v27
    %v209 = vpop.f32.mrb[0].mxu0
    %v210 = vadd.f32 %v92, %v209
    %v211 = vpop.f32.mrb[0].mxu0
    %212 = vmatprep.mubr.f32.mxu0 %v99
    %213 = vmatmul.mubr.f32.gmra.mrb[0].mxu0 %v29
    %v214 = vpop.f32.mrb[0].mxu0
    %v215 = vadd.f32 %v92, %v214
    %v216 = vpop.f32.mrb[0].mxu0
    %217 = vmatprep.mubr.f32.mxu0 %v102
    %218 = vmatmul.mubr.f32.gmra.mrb[0].mxu0 %v31
    %v219 = vpop.f32.mrb[0].mxu0
    %v220 = vadd.f32 %v92, %v219
    %v221 = vpop.f32.mrb[0].mxu0
    %222 = vmatprep.mubr.f32.mxu0 %v105
    %223 = vmatmul.mubr.f32.gmra.mrb[0].mxu0 %v33
    %v224 = vpop.f32.mrb[0].mxu0
    %v225 = vadd.f32 %v92, %v224
    %v226 = vpop.f32.mrb[0].mxu0
    %227 = vmatprep.mubr.f32.mxu0 %v108
    %228 = vmatmul.mubr.f32.gmra.mrb[0].mxu0 %v35
    %v229 = vpop.f32.mrb[0].mxu0
    %v230 = vadd.f32 %v92, %v229
    %v231 = vpop.f32.mrb[0].mxu0
    %232 = vmatprep.mubr.f32.mxu0 %v111
    %233 = vmatmul.mubr.f32.gmra.mrb[0].mxu0 %v37
    %v234 = vpop.f32.mrb[0].mxu0
    %v235 = vadd.f32 %v92, %v234
    %v236 = vpop.f32.mrb[0].mxu0
    %237 = vmatprep.mubr.f32.mxu0 %v114
    %238 = vmatmul.mubr.f32.gmra.mrb[0].mxu0 %v39
    %v239 = vpop.f32.mrb[0].mxu0
    %v240 = vadd.f32 %v92, %v239
    %v241 = vpop.f32.mrb[0].mxu0
    %242 = vmatprep.mubr.f32.mxu0 %v117
    %243 = vmatmul.mubr.f32.gmra.mrb[0].mxu0 %v41
    %v244 = vpop.f32.mrb[0].mxu0
    %v245 = vadd.f32 %v92, %v244
    %v246 = vpop.f32.mrb[0].mxu0
    %247 = vmatprep.mubr.f32.mxu0 %v120
    %248 = vmatmul.mubr.f32.gmra.mrb[0].mxu0 %v43
    %v249 = vpop.f32.mrb[0].mxu0
    %v250 = vadd.f32 %v92, %v249
    %v251 = vpop.f32.mrb[0].mxu0
    %252 = vmatprep.mubr.f32.mxu0 %v123
    %253 = vmatmul.mubr.f32.gmra.mrb[0].mxu0 %v45
    %v254 = vpop.f32.mrb[0].mxu0
    %v255 = vadd.f32 %v92, %v254
    %v256 = vpop.f32.mrb[0].mxu0
    %257 = vmatprep.mubr.f32.mxu0 %v126
    %258 = vmatmul.mubr.f32.gmra.mrb[0].mxu0 %v47
    %v259 = vpop.f32.mrb[0].mxu0
    %v260 = vadd.f32 %v92, %v259
    %v261 = vpop.f32.mrb[0].mxu0
    %262 = vmatprep.mubr.f32.mxu0 %v129
    %263 = vmatmul.mubr.f32.gmra.mrb[0].mxu0 %v49
    %v264 = vpop.f32.mrb[0].mxu0
    %v265 = vadd.f32 %v92, %v264
    %v266 = vpop.f32.mrb[0].mxu0
    %267 = vmatprep.mubr.f32.mxu0 %v132
    %268 = vmatmul.mubr.f32.gmra.mrb[0].mxu0 %v51
    %v269 = vpop.f32.mrb[0].mxu0
    %v270 = vadd.f32 %v92, %v269
    %v271 = vpop.f32.mrb[0].mxu0
    %272 = vmatprep.mubr.f32.mxu0 %v135
    %273 = vmatmul.mubr.f32.gmra.mrb[0].mxu0 %v53
    %v274 = vpop.f32.mrb[0].mxu0
    %v275 = vadd.f32 %v92, %v274
    %v276 = vpop.f32.mrb[0].mxu0
    %277 = vmatprep.mubr.f32.mxu0 %v138
    %278 = vmatmul.mubr.f32.gmra.mrb[0].mxu0 %v55
    %v279 = vpop.f32.mrb[0].mxu0
    %v280 = vadd.f32 %v92, %v279
    %v281 = vpop.f32.mrb[0].mxu0
    %282 = vmatprep.mubr.f32.mxu0 %v141
    %283 = vmatmul.mubr.f32.gmra.mrb[0].mxu0 %v57
    %v284 = vpop.f32.mrb[0].mxu0
    %v285 = vadd.f32 %v92, %v284
    %v286 = vpop.f32.mrb[0].mxu0
    %287 = vdwg.mxu0
    %vm288 = vcmp.gt.f32.partialorder %v210, 0.0
    %vm289 = vcmp.gt.f32.partialorder %v215, 0.0
    %vm290 = vcmp.gt.f32.partialorder %v220, 0.0
    %vm291 = vcmp.gt.f32.partialorder %v225, 0.0
    %vm292 = vcmp.gt.f32.partialorder %v230, 0.0
    %vm293 = vcmp.gt.f32.partialorder %v235, 0.0
    %vm294 = vcmp.gt.f32.partialorder %v240, 0.0
    %vm295 = vcmp.gt.f32.partialorder %v245, 0.0
    %vm296 = vcmp.gt.f32.partialorder %v250, 0.0
    %vm297 = vcmp.gt.f32.partialorder %v255, 0.0
    %vm298 = vcmp.gt.f32.partialorder %v260, 0.0
    %vm299 = vcmp.gt.f32.partialorder %v265, 0.0
    %vm300 = vcmp.gt.f32.partialorder %v270, 0.0
    %vm301 = vcmp.gt.f32.partialorder %v275, 0.0
    %vm302 = vcmp.gt.f32.partialorder %v280, 0.0
    %vm303 = vcmp.gt.f32.partialorder %v285, 0.0
    %v304 = vmul.f32 %v210, 0.1
    %v305 = vmul.f32 %v215, 0.1
    %v306 = vmul.f32 %v220, 0.1
    %v307 = vmul.f32 %v225, 0.1
    %v308 = vmul.f32 %v230, 0.1
    %v309 = vmul.f32 %v235, 0.1
    %v310 = vmul.f32 %v240, 0.1
    %v311 = vmul.f32 %v245, 0.1
    %v312 = vmul.f32 %v250, 0.1
    %v313 = vmul.f32 %v255, 0.1
    %v314 = vmul.f32 %v260, 0.1
    %v315 = vmul.f32 %v265, 0.1
    %v316 = vmul.f32 %v270, 0.1
    %v317 = vmul.f32 %v275, 0.1
    %v318 = vmul.f32 %v280, 0.1
    %v319 = vmul.f32 %v285, 0.1
    %v320 = vsel %vm288, %v210, %v304
    %v321 = vsel %vm289, %v215, %v305
    %v322 = vsel %vm290, %v220, %v306
    %v323 = vsel %vm291, %v225, %v307
    %v324 = vsel %vm292, %v230, %v308
    %v325 = vsel %vm293, %v235, %v309
    %v326 = vsel %vm294, %v240, %v310
    %v327 = vsel %vm295, %v245, %v311
    %v328 = vsel %vm296, %v250, %v312
    %v329 = vsel %vm297, %v255, %v313
    %v330 = vsel %vm298, %v260, %v314
    %v331 = vsel %vm299, %v265, %v315
    %v332 = vsel %vm300, %v270, %v316
    %v333 = vsel %vm301, %v275, %v317
    %v334 = vsel %vm302, %v280, %v318
    %v335 = vsel %vm303, %v285, %v319
    %v336 = vld [vmem:[%s3] sm:$0xff]
    %v337 = vld [vmem:[%s3 + $0x8] sm:$0xff]
    %v338 = vld [vmem:[%s3 + $0x10] sm:$0xff]
    %v339 = vld [vmem:[%s3 + $0x18] sm:$0xff]
    %v340 = vld [vmem:[%s3 + $0x20] sm:$0xff]
    %v341 = vld [vmem:[%s3 + $0x28] sm:$0xff]
    %v342 = vld [vmem:[%s3 + $0x30] sm:$0xff]
    %v343 = vld [vmem:[%s3 + $0x38] sm:$0xff]
    %v344 = vld [vmem:[%s4] sm:$0x1]
    %v346 = vlaneseq
    %v347 = vshrl.u32 %v346, 7
    %v348 = vsub.s32 0, %v347
    %v349 = vrot.slane %v344, %v348
    %vm351 = vcmask 523264
    %v353 = vsel %vm351, %v320, 0
    %v356 = vsel %vm351, %v321, 0
    %v359 = vsel %vm351, %v322, 0
    %v362 = vsel %vm351, %v323, 0
    %v365 = vsel %vm351, %v324, 0
    %v368 = vsel %vm351, %v325, 0
    %v371 = vsel %vm351, %v326, 0
    %v374 = vsel %vm351, %v327, 0
    %v377 = vsel %vm351, %v328, 0
    %v380 = vsel %vm351, %v329, 0
    %v383 = vsel %vm351, %v330, 0
    %v386 = vsel %vm351, %v331, 0
    %v389 = vsel %vm351, %v332, 0
    %v392 = vsel %vm351, %v333, 0
    %v395 = vsel %vm351, %v334, 0
    %v398 = vsel %vm351, %v335, 0
    %400 = vmatprep.subr.mxu0 0.0
    %401 = vmatpush1.msra.mxu0 %v336
    %402 = vmatprep.subr.mxu0 0.0
    %403 = vmatpush1.msra.mxu0 %v337
    %404 = vmatprep.subr.mxu0 0.0
    %405 = vmatpush1.msra.mxu0 %v338
    %406 = vmatprep.subr.mxu0 0.0
    %407 = vmatpush1.msra.mxu0 %v339
    %408 = vmatprep.subr.mxu0 0.0
    %409 = vmatpush1.msra.mxu0 %v340
    %410 = vmatprep.subr.mxu0 0.0
    %411 = vmatpush1.msra.mxu0 %v341
    %412 = vmatprep.subr.mxu0 0.0
    %413 = vmatpush1.msra.mxu0 %v342
    %414 = vmatprep.subr.mxu0 0.0
    %415 = vmatpush1.msra.mxu0 %v343
    %416 = vmatprep.subr.mxu0 0.0
    %417 = vmatpush1.msra.mxu0 0.0
    %418 = vmatprep.subr.mxu0 0.0
    %419 = vmatpush1.msra.mxu0 0.0
    %420 = vmatprep.subr.mxu0 0.0
    %421 = vmatpush1.msra.mxu0 0.0
    %422 = vmatprep.subr.mxu0 0.0
    %423 = vmatpush1.msra.mxu0 0.0
    %424 = vmatprep.subr.mxu0 0.0
    %425 = vmatpush1.msra.mxu0 0.0
    %426 = vmatprep.subr.mxu0 0.0
    %427 = vmatpush1.msra.mxu0 0.0
    %428 = vmatprep.subr.mxu0 0.0
    %429 = vmatpush1.msra.mxu0 0.0
    %430 = vmatprep.subr.mxu0 0.0
    %431 = vmatpush1.msra.mxu0 0.0
    %432 = vmatprep.subr.mxu0 0.0
    %433 = vmatpush1.msra.mxu0 0.0
    %434 = vmatprep.subr.mxu0 0.0
    %435 = vmatpush1.msra.mxu0 0.0
    %436 = vmatprep.subr.mxu0 0.0
    %437 = vmatpush1.msra.mxu0 0.0
    %438 = vmatprep.subr.mxu0 0.0
    %439 = vmatpush1.msra.mxu0 0.0
    %440 = vmatprep.subr.mxu0 0.0
    %441 = vmatpush1.msra.mxu0 0.0
    %442 = vmatprep.subr.mxu0 0.0
    %443 = vmatpush1.msra.mxu0 0.0
    %444 = vmatprep.subr.mxu0 0.0
    %445 = vmatpush1.msra.mxu0 0.0
    %446 = vmatprep.subr.mxu0 0.0
    %447 = vmatpush1.msra.mxu0 0.0
    %448 = vmatprep.subr.mxu0 0.0
    %449 = vmatpush1.msra.mxu0 0.0
    %450 = vmatprep.subr.mxu0 0.0
    %451 = vmatpush1.msra.mxu0 0.0
    %452 = vmatprep.subr.mxu0 0.0
    %453 = vmatpush1.msra.mxu0 0.0
    %454 = vmatprep.subr.mxu0 0.0
    %455 = vmatpush1.msra.mxu0 0.0
    %456 = vmatprep.subr.mxu0 0.0
    %457 = vmatpush1.msra.mxu0 0.0
    %458 = vmatprep.subr.mxu0 0.0
    %459 = vmatpush1.msra.mxu0 0.0
    %460 = vmatprep.subr.mxu0 0.0
    %461 = vmatpush1.msra.mxu0 0.0
    %462 = vmatprep.subr.mxu0 0.0
    %463 = vmatpush1.msra.mxu0 0.0
    %464 = vmatprep.mubr.f32.mxu0 0.0
    %465 = vmatmul.mubr.f32.gmra.mrb[0].mxu0 %v353
    %v466 = vpop.f32.mrb[0].mxu0
    %v467 = vadd.f32 %v349, %v466
    %v468 = vpop.f32.mrb[0].mxu0
    %469 = vmatprep.mubr.f32.mxu0 0.0
    %470 = vmatmul.mubr.f32.gmra.mrb[0].mxu0 %v356
    %v471 = vpop.f32.mrb[0].mxu0
    %v472 = vadd.f32 %v349, %v471
    %v473 = vpop.f32.mrb[0].mxu0
    %474 = vmatprep.mubr.f32.mxu0 0.0
    %475 = vmatmul.mubr.f32.gmra.mrb[0].mxu0 %v359
    %v476 = vpop.f32.mrb[0].mxu0
    %v477 = vadd.f32 %v349, %v476
    %v478 = vpop.f32.mrb[0].mxu0
    %479 = vmatprep.mubr.f32.mxu0 0.0
    %480 = vmatmul.mubr.f32.gmra.mrb[0].mxu0 %v362
    %v481 = vpop.f32.mrb[0].mxu0
    %v482 = vadd.f32 %v349, %v481
    %v483 = vpop.f32.mrb[0].mxu0
    %484 = vmatprep.mubr.f32.mxu0 0.0
    %485 = vmatmul.mubr.f32.gmra.mrb[0].mxu0 %v365
    %v486 = vpop.f32.mrb[0].mxu0
    %v487 = vadd.f32 %v349, %v486
    %v488 = vpop.f32.mrb[0].mxu0
    %489 = vmatprep.mubr.f32.mxu0 0.0
    %490 = vmatmul.mubr.f32.gmra.mrb[0].mxu0 %v368
    %v491 = vpop.f32.mrb[0].mxu0
    %v492 = vadd.f32 %v349, %v491
    %v493 = vpop.f32.mrb[0].mxu0
    %494 = vmatprep.mubr.f32.mxu0 0.0
    %495 = vmatmul.mubr.f32.gmra.mrb[0].mxu0 %v371
    %v496 = vpop.f32.mrb[0].mxu0
    %v497 = vadd.f32 %v349, %v496
    %v498 = vpop.f32.mrb[0].mxu0
    %499 = vmatprep.mubr.f32.mxu0 0.0
    %500 = vmatmul.mubr.f32.gmra.mrb[0].mxu0 %v374
    %v501 = vpop.f32.mrb[0].mxu0
    %v502 = vadd.f32 %v349, %v501
    %v503 = vpop.f32.mrb[0].mxu0
    %504 = vmatprep.mubr.f32.mxu0 0.0
    %505 = vmatmul.mubr.f32.gmra.mrb[0].mxu0 %v377
    %v506 = vpop.f32.mrb[0].mxu0
    %v507 = vadd.f32 %v349, %v506
    %v508 = vpop.f32.mrb[0].mxu0
    %509 = vmatprep.mubr.f32.mxu0 0.0
    %510 = vmatmul.mubr.f32.gmra.mrb[0].mxu0 %v380
    %v511 = vpop.f32.mrb[0].mxu0
    %v512 = vadd.f32 %v349, %v511
    %v513 = vpop.f32.mrb[0].mxu0
    %514 = vmatprep.mubr.f32.mxu0 0.0
    %515 = vmatmul.mubr.f32.gmra.mrb[0].mxu0 %v383
    %v516 = vpop.f32.mrb[0].mxu0
    %v517 = vadd.f32 %v349, %v516
    %v518 = vpop.f32.mrb[0].mxu0
    %519 = vmatprep.mubr.f32.mxu0 0.0
    %520 = vmatmul.mubr.f32.gmra.mrb[0].mxu0 %v386
    %v521 = vpop.f32.mrb[0].mxu0
    %v522 = vadd.f32 %v349, %v521
    %v523 = vpop.f32.mrb[0].mxu0
    %524 = vmatprep.mubr.f32.mxu0 0.0
    %525 = vmatmul.mubr.f32.gmra.mrb[0].mxu0 %v389
    %v526 = vpop.f32.mrb[0].mxu0
    %v527 = vadd.f32 %v349, %v526
    %v528 = vpop.f32.mrb[0].mxu0
    %529 = vmatprep.mubr.f32.mxu0 0.0
    %530 = vmatmul.mubr.f32.gmra.mrb[0].mxu0 %v392
    %v531 = vpop.f32.mrb[0].mxu0
    %v532 = vadd.f32 %v349, %v531
    %v533 = vpop.f32.mrb[0].mxu0
    %534 = vmatprep.mubr.f32.mxu0 0.0
    %535 = vmatmul.mubr.f32.gmra.mrb[0].mxu0 %v395
    %v536 = vpop.f32.mrb[0].mxu0
    %v537 = vadd.f32 %v349, %v536
    %v538 = vpop.f32.mrb[0].mxu0
    %539 = vmatprep.mubr.f32.mxu0 0.0
    %540 = vmatmul.mubr.f32.gmra.mrb[0].mxu0 %v398
    %v541 = vpop.f32.mrb[0].mxu0
    %v542 = vadd.f32 %v349, %v541
    %v543 = vpop.f32.mrb[0].mxu0
    %544 = vdwg.mxu0
    %vm545 = vcmp.gt.f32.partialorder %v467, 0.0
    %vm546 = vcmp.gt.f32.partialorder %v472, 0.0
    %vm547 = vcmp.gt.f32.partialorder %v477, 0.0
    %vm548 = vcmp.gt.f32.partialorder %v482, 0.0
    %vm549 = vcmp.gt.f32.partialorder %v487, 0.0
    %vm550 = vcmp.gt.f32.partialorder %v492, 0.0
    %vm551 = vcmp.gt.f32.partialorder %v497, 0.0
    %vm552 = vcmp.gt.f32.partialorder %v502, 0.0
    %vm553 = vcmp.gt.f32.partialorder %v507, 0.0
    %vm554 = vcmp.gt.f32.partialorder %v512, 0.0
    %vm555 = vcmp.gt.f32.partialorder %v517, 0.0
    %vm556 = vcmp.gt.f32.partialorder %v522, 0.0
    %vm557 = vcmp.gt.f32.partialorder %v527, 0.0
    %vm558 = vcmp.gt.f32.partialorder %v532, 0.0
    %vm559 = vcmp.gt.f32.partialorder %v537, 0.0
    %vm560 = vcmp.gt.f32.partialorder %v542, 0.0
    %v561 = vmul.f32 %v467, 0.1
    %v562 = vmul.f32 %v472, 0.1
    %v563 = vmul.f32 %v477, 0.1
    %v564 = vmul.f32 %v482, 0.1
    %v565 = vmul.f32 %v487, 0.1
    %v566 = vmul.f32 %v492, 0.1
    %v567 = vmul.f32 %v497, 0.1
    %v568 = vmul.f32 %v502, 0.1
    %v569 = vmul.f32 %v507, 0.1
    %v570 = vmul.f32 %v512, 0.1
    %v571 = vmul.f32 %v517, 0.1
    %v572 = vmul.f32 %v522, 0.1
    %v573 = vmul.f32 %v527, 0.1
    %v574 = vmul.f32 %v532, 0.1
    %v575 = vmul.f32 %v537, 0.1
    %v576 = vmul.f32 %v542, 0.1
    %v577 = vsel %vm545, %v467, %v561
    %v578 = vsel %vm546, %v472, %v562
    %v579 = vsel %vm547, %v477, %v563
    %v580 = vsel %vm548, %v482, %v564
    %v581 = vsel %vm549, %v487, %v565
    %v582 = vsel %vm550, %v492, %v566
    %v583 = vsel %vm551, %v497, %v567
    %v584 = vsel %vm552, %v502, %v568
    %v585 = vsel %vm553, %v507, %v569
    %v586 = vsel %vm554, %v512, %v570
    %v587 = vsel %vm555, %v517, %v571
    %v588 = vsel %vm556, %v522, %v572
    %v589 = vsel %vm557, %v527, %v573
    %v590 = vsel %vm558, %v532, %v574
    %v591 = vsel %vm559, %v537, %v575
    %v592 = vsel %vm560, %v542, %v576
    %v593 = vld [vmem:[%s5] sm:$0xff]
    %v594 = vld [vmem:[%s6] sm:$0xff]
    %596 = vset.pattern.permute.xlu0 0
    %597 = vperm.xlu0 %596, %v594
    %v598 = vpop.permute.xlu0 %597
    %vm600 = vcmask 130048
    %v602 = vsel %vm600, %v593, 0
    %v605 = vsel %vm600, %v577, 0
    %v608 = vsel %vm600, %v578, 0
    %v611 = vsel %vm600, %v579, 0
    %v614 = vsel %vm600, %v580, 0
    %v617 = vsel %vm600, %v581, 0
    %v620 = vsel %vm600, %v582, 0
    %v623 = vsel %vm600, %v583, 0
    %v626 = vsel %vm600, %v584, 0
    %v629 = vsel %vm600, %v585, 0
    %v632 = vsel %vm600, %v586, 0
    %v635 = vsel %vm600, %v587, 0
    %v638 = vsel %vm600, %v588, 0
    %v641 = vsel %vm600, %v589, 0
    %v644 = vsel %vm600, %v590, 0
    %v647 = vsel %vm600, %v591, 0
    %v650 = vsel %vm600, %v592, 0
    %652 = vmatprep.subr.mxu0 0.0
    %653 = vmatpush1.xpose.msra.mxu0 %v605
    %654 = vmatprep.subr.mxu0 0.0
    %655 = vmatpush1.xpose.msra.mxu0 %v608
    %656 = vmatprep.subr.mxu0 0.0
    %657 = vmatpush1.xpose.msra.mxu0 %v611
    %658 = vmatprep.subr.mxu0 0.0
    %659 = vmatpush1.xpose.msra.mxu0 %v614
    %660 = vmatprep.subr.mxu0 0.0
    %661 = vmatpush1.xpose.msra.mxu0 %v617
    %662 = vmatprep.subr.mxu0 0.0
    %663 = vmatpush1.xpose.msra.mxu0 %v620
    %664 = vmatprep.subr.mxu0 0.0
    %665 = vmatpush1.xpose.msra.mxu0 %v623
    %666 = vmatprep.subr.mxu0 0.0
    %667 = vmatpush1.xpose.msra.mxu0 %v626
    %668 = vmatprep.subr.mxu0 0.0
    %669 = vmatpush1.xpose.msra.mxu0 %v629
    %670 = vmatprep.subr.mxu0 0.0
    %671 = vmatpush1.xpose.msra.mxu0 %v632
    %672 = vmatprep.subr.mxu0 0.0
    %673 = vmatpush1.xpose.msra.mxu0 %v635
    %674 = vmatprep.subr.mxu0 0.0
    %675 = vmatpush1.xpose.msra.mxu0 %v638
    %676 = vmatprep.subr.mxu0 0.0
    %677 = vmatpush1.xpose.msra.mxu0 %v641
    %678 = vmatprep.subr.mxu0 0.0
    %679 = vmatpush1.xpose.msra.mxu0 %v644
    %680 = vmatprep.subr.mxu0 0.0
    %681 = vmatpush1.xpose.msra.mxu0 %v647
    %682 = vmatprep.subr.mxu0 0.0
    %683 = vmatpush1.xpose.msra.mxu0 %v650
    %684 = vmatprep.subr.mxu0 0.0
    %685 = vmatpush1.xpose.msra.mxu0 0.0
    %686 = vmatprep.subr.mxu0 0.0
    %687 = vmatpush1.xpose.msra.mxu0 0.0
    %688 = vmatprep.subr.mxu0 0.0
    %689 = vmatpush1.xpose.msra.mxu0 0.0
    %690 = vmatprep.subr.mxu0 0.0
    %691 = vmatpush1.xpose.msra.mxu0 0.0
    %692 = vmatprep.subr.mxu0 0.0
    %693 = vmatpush1.xpose.msra.mxu0 0.0
    %694 = vmatprep.subr.mxu0 0.0
    %695 = vmatpush1.xpose.msra.mxu0 0.0
    %696 = vmatprep.subr.mxu0 0.0
    %697 = vmatpush1.xpose.msra.mxu0 0.0
    %698 = vmatprep.subr.mxu0 0.0
    %699 = vmatpush1.xpose.msra.mxu0 0.0
    %700 = vmatprep.subr.mxu0 0.0
    %701 = vmatpush1.xpose.msra.mxu0 0.0
    %702 = vmatprep.subr.mxu0 0.0
    %703 = vmatpush1.xpose.msra.mxu0 0.0
    %704 = vmatprep.subr.mxu0 0.0
    %705 = vmatpush1.xpose.msra.mxu0 0.0
    %706 = vmatprep.subr.mxu0 0.0
    %707 = vmatpush1.xpose.msra.mxu0 0.0
    %708 = vmatprep.subr.mxu0 0.0
    %709 = vmatpush1.xpose.msra.mxu0 0.0
    %710 = vmatprep.subr.mxu0 0.0
    %711 = vmatpush1.xpose.msra.mxu0 0.0
    %712 = vmatprep.subr.mxu0 0.0
    %713 = vmatpush1.xpose.msra.mxu0 0.0
    %714 = vmatprep.subr.mxu0 0.0
    %715 = vmatpush1.xpose.msra.mxu0 0.0
    %716 = vmatprep.mubr.f32.mxu0 0.0
    %717 = vmatmul.mubr.f32.gmra.mrb[0].mxu0 %v602
    %v718 = vpop.f32.mrb[0].mxu0
    %v719 = vadd.f32 %v598, %v718
    %v720 = vpop.f32.mrb[0].mxu0
    %721 = vdwg.mxu0
    %722 = vst [vmem:[#allocation2] sm:$0xff] %v719
    // Predicated region
    $region30: #{tpu_custom_call.1} parent=1 // pred_check
      _
    $region31: #{tpu_custom_call.1} parent=1 // pred_check_branch
      %724 = sbr.rel (0) target = $region33
    $region32: #{tpu_custom_call.1} parent=1 // pred_region
      %s726 = ssub.s32 128, 128
      %727 = vsyncadd [#allocation3], %s726
      %s729 = sshll.u32 [#allocation2], 4
      %s730 = int_to_ptr.vmem [resolvable:$true] %s729
      %732 = dma.vmem_to_hbm [thread:$0]  %s730, 128, %s7, [#allocation3]
    $region33: #{tpu_custom_call.1} parent=1 // pred_fallthru
      _
    // Predicated region
    $region34: #{tpu_custom_call.1} parent=1 // pred_check
      _
    $region35: #{tpu_custom_call.1} parent=1 // pred_check_branch
      %734 = sbr.rel (0) target = $region37
    $region36: #{tpu_custom_call.1} parent=1 // pred_region
      %735 = dma.done [#allocation3], 128
    $region37: #{tpu_custom_call.1} parent=1 // pred_fallthru
      _
    %736 = vsyncpa [#allocation3], 1

</llo_original>
